<compile_context>
chip_gen: v5e
topology: v5e:2x2
jax: 0.10.0
libtpu: 0.0.40
codegen_flags: <defaults>
</compile_context>

<pallas_src>
import jax
import jax.numpy as jnp
from jax.experimental import pallas as pl
from jax.experimental.pallas import tpu as pltpu


# ----------------------------------------------------------------------------
# Hardware heuristics (generation-aware fold / tiling)
# ----------------------------------------------------------------------------
def _tpu_arch():
    """Heuristic (mxu_width, tensorcores_per_chip, has_bf16_valu)."""
    try:
        kind = jax.devices()[0].device_kind.lower()
    except Exception:
        kind = ""
    if "v6" in kind:                  # v6e: 2x256^2 MXU, 1 TC, bf16 VPU
        return 256, 1, True
    if "7x" in kind or "v7" in kind:  # TPU7x: 2x256^2 MXU, 2 TCs, bf16 VPU
        return 256, 2, True
    # v5e / v5p / v4 / unknown: 128-wide MXU, single effective core, no bf16 VALU.
    return 128, 1, False


# ----------------------------------------------------------------------------
# Kernel
# ----------------------------------------------------------------------------
def _make_mlp_kernel(num_weights: int, bf16_relu: bool):
    """Fused body: x @ W0 -> relu -> ... -> relu -> @ W_last."""

    def kernel(x_ref, *refs):
        w_refs = refs[:num_weights]
        o_ref = refs[num_weights]
        h = x_ref[...]                                        # bf16 operands in
        for i in range(num_weights):
            h = jnp.dot(h, w_refs[i][...],
                        preferred_element_type=jnp.float32)   # f32 accumulate
            if i < num_weights - 1:
                if bf16_relu:
                    # v6e/v7x: downcast first, ReLU in bf16 (halves vmax count
                    # and live intermediate footprint; numerically identical).
                    h = jnp.maximum(h.astype(jnp.bfloat16), 0)
                else:
                    # v5e: no bf16 VALU -> ReLU in f32, cast only for the MXU.
                    h = jnp.maximum(h, 0.0).astype(jnp.bfloat16)
        o_ref[...] = h.astype(o_ref.dtype)

    return kernel


# ----------------------------------------------------------------------------
# Helpers
# ----------------------------------------------------------------------------
def fold_weights(weights_t, group):
    """bf16 block-diagonal fold: W (din,dout) -> kron(I_g, W) (g*din, g*dout).

    Single kron per layer (no scatter chain); call once and reuse if the MLP
    is evaluated repeatedly.
    """
    eye = jnp.eye(group, dtype=jnp.bfloat16)
    return [jnp.kron(eye, w.astype(jnp.bfloat16)) for w in weights_t]


def _pick_tile(rows, tile_m, num_cores):
    """Balanced batch tile (in folded rows), multiple of 16, small padding."""
    steps = max(1, pl.cdiv(rows, tile_m))
    if num_cores > 1:
        # v7x: keep >=2 grid steps per TensorCore (DMA double-buffering and
        # load balance) when rows allow a reasonable tile.
        min_steps = 2 * num_cores
        if steps < min_steps and rows >= min_steps * 16:
            steps = min_steps
    # Balanced split: pad is at most 15 rows after rounding to the bf16
    # (16,128) sublane pack, instead of up to tile_m-1.
    tm = pl.cdiv(rows, steps)
    tm = max(16, ((tm + 15) // 16) * 16)
    return tm


# ----------------------------------------------------------------------------
# Wrapper
# ----------------------------------------------------------------------------
def mlp_forward(x, weights_t, *, group=None, tile_m=4096, out_dtype=jnp.float32):
    """Fused MLP forward pass with a single pallas_call.

    Args:
      x:         [batch, n_input_dims] array (any float dtype).
      weights_t: list of (in_dim, out_dim) float32 weights (transposed from
                 PyTorch's (out, in) layout).
      group:     lane-fold factor; None -> auto (g=4 on 256-wide MXU v6e/v7x,
                 g=2 on 128-wide MXU v5e).
      tile_m:    requested tile size over the folded batch rows.
      out_dtype: output dtype (f32 to match the torch module; bf16 halves the
                 lane-sparse writeback if downstream accepts it).
    """
    batch, n_in = x.shape
    n_out = weights_t[-1].shape[1]
    n_hidden = weights_t[0].shape[1]
    num_w = len(weights_t)

    mxu, num_cores, bf16_relu = _tpu_arch()
    if group is None:
        # Fill the MXU K/N with the hidden width: 256//64=4 on v6e/v7x,
        # 128//64=2 on v5e.  Larger folds only add zero-block FLOPs.
        group = int(max(1, min(8, mxu // max(n_hidden, 1))))
    g = group

    folded_w = fold_weights(weights_t, g)

    rows = pl.cdiv(batch, g)                 # folded rows needed
    tm = _pick_tile(rows, tile_m, num_cores)
    grid_m = pl.cdiv(rows, tm)
    rows_pad = grid_m * tm
    batch_pad = rows_pad * g

    x_p = x.astype(jnp.bfloat16)
    if batch_pad != batch:
        # Safe: all layers are bias-free, padded rows are sliced off below.
        x_p = jnp.pad(x_p, ((0, batch_pad - batch), (0, 0)))
    x_f = x_p.reshape(rows_pad, g * n_in)    # contiguous (free) reshape

    kernel = _make_mlp_kernel(num_w, bf16_relu)

    # Advisory cost hint (reflects actual MXU work incl. zero blocks).
    flops = 2 * rows_pad * sum(int(w.shape[0]) * int(w.shape[1]) for w in folded_w)
    bytes_accessed = (x_f.size * 2
                      + sum(int(w.size) for w in folded_w) * 2
                      + rows_pad * g * n_out * jnp.dtype(out_dtype).itemsize)
    cost = pl.CostEstimate(flops=flops, transcendentals=0,
                           bytes_accessed=bytes_accessed)

    def run(weight_pipeline_mode):
        in_specs = [pl.BlockSpec((tm, g * n_in), lambda i: (i, 0))]
        for w in folded_w:
            if weight_pipeline_mode is None:
                in_specs.append(pl.BlockSpec(w.shape, lambda i: (0, 0)))
            else:
                in_specs.append(pl.BlockSpec(w.shape, lambda i: (0, 0),
                                             pipeline_mode=weight_pipeline_mode))
        out_spec = pl.BlockSpec((tm, g * n_out), lambda i: (i, 0))
        return pl.pallas_call(
            kernel,
            out_shape=jax.ShapeDtypeStruct((rows_pad, g * n_out), out_dtype),
            grid_spec=pltpu.PrefetchScalarGridSpec(
                num_scalar_prefetch=0,
                grid=(grid_m,),
                in_specs=in_specs,
                out_specs=out_spec,
            ),
            compiler_params=pltpu.CompilerParams(
                dimension_semantics=("parallel",),
                vmem_limit_bytes=32 * 1024 * 1024,
            ),
            cost_estimate=cost,
        )(x_f, *folded_w)

    try:
        # Weights have constant index_maps -> a second pipeline buffer is waste.
        out_f = run(pl.Buffered(1))
    except Exception:
        # pipeline_mode / Buffered unavailable on this jax: default buffering.
        out_f = run(None)

    # Unfold lanes back to batch rows and drop padding.
    return out_f.reshape(rows_pad * g, n_out)[:batch]


# ----------------------------------------------------------------------------
# Deterministic parameter init (kaiming_uniform_, nonlinearity='relu')
# ----------------------------------------------------------------------------
def _kaiming_uniform(key, out_dim, in_dim):
    # gain = sqrt(2) for relu; bound = gain * sqrt(3 / fan_in) = sqrt(6 / fan_in)
    bound = jnp.sqrt(6.0 / in_dim)
    # PyTorch weight shape is (out, in); sample in that shape, transpose later.
    return jax.random.uniform(key, (out_dim, in_dim), jnp.float32,
                              minval=-bound, maxval=bound)


def init_mlp_params(key, n_input_dims, n_neurons, n_hidden_layers, n_output_dims):
    dims = [(n_input_dims, n_neurons)]
    for _ in range(n_hidden_layers - 1):
        dims.append((n_neurons, n_neurons))
    dims.append((n_neurons, n_output_dims))

    keys = jax.random.split(key, len(dims))
    weights_t = []
    for k, (d_in, d_out) in zip(keys, dims):
        w = _kaiming_uniform(k, d_out, d_in)   # (out, in) like torch
        weights_t.append(w.T)                  # store as (in, out) for the kernel
    return weights_t


# ----------------------------------------------------------------------------
# Reference (same bf16-operand / f32-accumulate math path as the kernel)
# ----------------------------------------------------------------------------
def mlp_reference(x, weights_t):
    h = x.astype(jnp.float32)
    for i, w in enumerate(weights_t):
        h = jnp.dot(h.astype(jnp.bfloat16), w.astype(jnp.bfloat16),
                    preferred_element_type=jnp.float32)
        if i < len(weights_t) - 1:
            h = jnp.maximum(h, 0.0)
    return h


# ----------------------------------------------------------------------------
# Main
# ----------------------------------------------------------------------------
if __name__ == "__main__":
    # Small config consistent with the module's __init__:
    cfg = dict(n_input_dims=16, n_neurons=64, n_hidden_layers=3, n_output_dims=3)
    batch = 256

    key = jax.random.PRNGKey(0)
    k_w, k_x = jax.random.split(key)

    weights_t = init_mlp_params(
        k_w, cfg["n_input_dims"], cfg["n_neurons"],
        cfg["n_hidden_layers"], cfg["n_output_dims"])

    x = jax.random.normal(k_x, (batch, cfg["n_input_dims"]), jnp.float32)

    out = mlp_forward(x, weights_t)          # generation-aware group / tiling
    out = jax.block_until_ready(out)

    ref = jax.block_until_ready(mlp_reference(x, weights_t))
    assert out.shape == (batch, cfg["n_output_dims"])
    # bf16 MXU operands -> compare at loosened tolerance vs the bf16 reference.
    assert jnp.allclose(out, ref, atol=1e-2, rtol=1e-2), "mismatch vs reference"

    # TODO(synk): loss_scale only affects the backward hook (gradient scaling),
    # so it has no effect on the forward pass implemented here.
    print("KERNEL_OK")
</pallas_src>

<mosaic_0001>
module attributes {stable_mosaic.version = 11 : i64} {
  func.func @kernel(%arg0: i32, %arg1: memref<128x32xbf16, #tpu.memory_space<vmem>>, %arg2: memref<32x128xbf16, #tpu.memory_space<vmem>>, %arg3: memref<128x128xbf16, #tpu.memory_space<vmem>>, %arg4: memref<128x128xbf16, #tpu.memory_space<vmem>>, %arg5: memref<128x6xbf16, #tpu.memory_space<vmem>>, %arg6: memref<128x6xf32, #tpu.memory_space<vmem>>) attributes {dimension_semantics = [#tpu.dimension_semantics<parallel>], iteration_bounds = array<i64: 1>, scalar_prefetch = 0 : i64, scratch_operands = 0 : i64, tpu.core_type = #tpu.core_type<tc>, window_params = [{transform_indices = @transform_0, window_bounds = array<i64: 128, 32>}, {pipeline_mode = #tpu.pipeline_mode<synchronous>, transform_indices = @transform_1, window_bounds = array<i64: 32, 128>}, {pipeline_mode = #tpu.pipeline_mode<synchronous>, transform_indices = @transform_2, window_bounds = array<i64: 128, 128>}, {pipeline_mode = #tpu.pipeline_mode<synchronous>, transform_indices = @transform_3, window_bounds = array<i64: 128, 128>}, {pipeline_mode = #tpu.pipeline_mode<synchronous>, transform_indices = @transform_4, window_bounds = array<i64: 128, 6>}, {transform_indices = @transform_5, window_bounds = array<i64: 128, 6>}]} {
    %c0 = arith.constant 0 : index
    %c0_0 = arith.constant 0 : index
    %0 = vector.load %arg1[%c0, %c0_0] : memref<128x32xbf16, #tpu.memory_space<vmem>>, vector<128x32xbf16>
    %c0_1 = arith.constant 0 : index
    %c0_2 = arith.constant 0 : index
    %1 = vector.load %arg2[%c0_1, %c0_2] : memref<32x128xbf16, #tpu.memory_space<vmem>>, vector<32x128xbf16>
    %cst = arith.constant dense<0.000000e+00> : vector<128x128xf32>
    %2 = tpu.matmul %0, %1, %cst {dimension_numbers = #tpu.dot_dimension_numbers<[1], [0], [0], [1], [0, 0, 1, 1], [], []>} : vector<128x32xbf16>, vector<32x128xbf16>, vector<128x128xf32> -> vector<128x128xf32>
    %cst_3 = arith.constant 0.000000e+00 : f32
    %3 = vector.broadcast %cst_3 : f32 to vector<128x128xf32>
    %4 = arith.maximumf %2, %3 : vector<128x128xf32>
    %5 = arith.truncf %4 : vector<128x128xf32> to vector<128x128xbf16>
    %c0_4 = arith.constant 0 : index
    %c0_5 = arith.constant 0 : index
    %6 = vector.load %arg3[%c0_4, %c0_5] : memref<128x128xbf16, #tpu.memory_space<vmem>>, vector<128x128xbf16>
    %cst_6 = arith.constant dense<0.000000e+00> : vector<128x128xf32>
    %7 = tpu.matmul %5, %6, %cst_6 {dimension_numbers = #tpu.dot_dimension_numbers<[1], [0], [0], [1], [0, 0, 1, 1], [], []>} : vector<128x128xbf16>, vector<128x128xbf16>, vector<128x128xf32> -> vector<128x128xf32>
    %cst_7 = arith.constant 0.000000e+00 : f32
    %8 = vector.broadcast %cst_7 : f32 to vector<128x128xf32>
    %9 = arith.maximumf %7, %8 : vector<128x128xf32>
    %10 = arith.truncf %9 : vector<128x128xf32> to vector<128x128xbf16>
    %c0_8 = arith.constant 0 : index
    %c0_9 = arith.constant 0 : index
    %11 = vector.load %arg4[%c0_8, %c0_9] : memref<128x128xbf16, #tpu.memory_space<vmem>>, vector<128x128xbf16>
    %cst_10 = arith.constant dense<0.000000e+00> : vector<128x128xf32>
    %12 = tpu.matmul %10, %11, %cst_10 {dimension_numbers = #tpu.dot_dimension_numbers<[1], [0], [0], [1], [0, 0, 1, 1], [], []>} : vector<128x128xbf16>, vector<128x128xbf16>, vector<128x128xf32> -> vector<128x128xf32>
    %cst_11 = arith.constant 0.000000e+00 : f32
    %13 = vector.broadcast %cst_11 : f32 to vector<128x128xf32>
    %14 = arith.maximumf %12, %13 : vector<128x128xf32>
    %15 = arith.truncf %14 : vector<128x128xf32> to vector<128x128xbf16>
    %c0_12 = arith.constant 0 : index
    %c0_13 = arith.constant 0 : index
    %16 = vector.load %arg5[%c0_12, %c0_13] : memref<128x6xbf16, #tpu.memory_space<vmem>>, vector<128x6xbf16>
    %cst_14 = arith.constant dense<0.000000e+00> : vector<128x6xf32>
    %17 = tpu.matmul %15, %16, %cst_14 {dimension_numbers = #tpu.dot_dimension_numbers<[1], [0], [0], [1], [0, 0, 1, 1], [], []>} : vector<128x128xbf16>, vector<128x6xbf16>, vector<128x6xf32> -> vector<128x6xf32>
    %c0_15 = arith.constant 0 : index
    %c0_16 = arith.constant 0 : index
    %18 = vector.load %arg6[%c0_15, %c0_16] : memref<128x6xf32, #tpu.memory_space<vmem>>, vector<128x6xf32>
    tpu.vector_store %arg6[%c0_15, %c0_16], %17 {strides = array<i32>} : memref<128x6xf32, #tpu.memory_space<vmem>>, vector<128x6xf32>,
    return
  }
  func.func @transform_0(%arg0: i32) -> (i32, i32) {
    %c0_i32 = arith.constant 0 : i32
    %c0_i32_0 = arith.constant 0 : i32
    return %arg0, %c0_i32 : i32, i32
  }
  func.func @transform_1(%arg0: i32) -> (i32, i32) {
    %c0_i32 = arith.constant 0 : i32
    %c0_i32_0 = arith.constant 0 : i32
    %c0_i32_1 = arith.constant 0 : i32
    return %c0_i32, %c0_i32_0 : i32, i32
  }
  func.func @transform_2(%arg0: i32) -> (i32, i32) {
    %c0_i32 = arith.constant 0 : i32
    %c0_i32_0 = arith.constant 0 : i32
    %c0_i32_1 = arith.constant 0 : i32
    return %c0_i32, %c0_i32_0 : i32, i32
  }
  func.func @transform_3(%arg0: i32) -> (i32, i32) {
    %c0_i32 = arith.constant 0 : i32
    %c0_i32_0 = arith.constant 0 : i32
    %c0_i32_1 = arith.constant 0 : i32
    return %c0_i32, %c0_i32_0 : i32, i32
  }
  func.func @transform_4(%arg0: i32) -> (i32, i32) {
    %c0_i32 = arith.constant 0 : i32
    %c0_i32_0 = arith.constant 0 : i32
    %c0_i32_1 = arith.constant 0 : i32
    return %c0_i32, %c0_i32_0 : i32, i32
  }
  func.func @transform_5(%arg0: i32) -> (i32, i32) {
    %c0_i32 = arith.constant 0 : i32
    %c0_i32_0 = arith.constant 0 : i32
    return %arg0, %c0_i32 : i32, i32
  }
}

module attributes {stable_mosaic.version = 11 : i64} {
  func.func @kernel(%arg0: i32, %arg1: memref<128x32xbf16, #tpu.memory_space<vmem>>, %arg2: memref<32x128xbf16, #tpu.memory_space<vmem>>, %arg3: memref<128x128xbf16, #tpu.memory_space<vmem>>, %arg4: memref<128x128xbf16, #tpu.memory_space<vmem>>, %arg5: memref<128x6xbf16, #tpu.memory_space<vmem>>, %arg6: memref<128x6xf32, #tpu.memory_space<vmem>>) attributes {dimension_semantics = [#tpu.dimension_semantics<parallel>], iteration_bounds = array<i64: 1>, scalar_prefetch = 0 : i64, scratch_operands = 0 : i64, tpu.core_type = #tpu.core_type<tc>, window_params = [{transform_indices = @transform_0, window_bounds = array<i64: 128, 32>}, {pipeline_mode = #tpu.pipeline_mode<synchronous>, transform_indices = @transform_1, window_bounds = array<i64: 32, 128>}, {pipeline_mode = #tpu.pipeline_mode<synchronous>, transform_indices = @transform_2, window_bounds = array<i64: 128, 128>}, {pipeline_mode = #tpu.pipeline_mode<synchronous>, transform_indices = @transform_3, window_bounds = array<i64: 128, 128>}, {pipeline_mode = #tpu.pipeline_mode<synchronous>, transform_indices = @transform_4, window_bounds = array<i64: 128, 6>}, {transform_indices = @transform_5, window_bounds = array<i64: 128, 6>}]} {
    %c0 = arith.constant 0 : index
    %c0_0 = arith.constant 0 : index
    %0 = vector.load %arg1[%c0, %c0_0] : memref<128x32xbf16, #tpu.memory_space<vmem>>, vector<128x32xbf16>
    %c0_1 = arith.constant 0 : index
    %c0_2 = arith.constant 0 : index
    %1 = vector.load %arg2[%c0_1, %c0_2] : memref<32x128xbf16, #tpu.memory_space<vmem>>, vector<32x128xbf16>
    %cst = arith.constant dense<0.000000e+00> : vector<128x128xf32>
    %2 = tpu.matmul %0, %1, %cst {dimension_numbers = #tpu.dot_dimension_numbers<[1], [0], [0], [1], [0, 0, 1, 1], [], []>} : vector<128x32xbf16>, vector<32x128xbf16>, vector<128x128xf32> -> vector<128x128xf32>
    %cst_3 = arith.constant 0.000000e+00 : f32
    %3 = vector.broadcast %cst_3 : f32 to vector<128x128xf32>
    %4 = arith.maximumf %2, %3 : vector<128x128xf32>
    %5 = arith.truncf %4 : vector<128x128xf32> to vector<128x128xbf16>
    %c0_4 = arith.constant 0 : index
    %c0_5 = arith.constant 0 : index
    %6 = vector.load %arg3[%c0_4, %c0_5] : memref<128x128xbf16, #tpu.memory_space<vmem>>, vector<128x128xbf16>
    %cst_6 = arith.constant dense<0.000000e+00> : vector<128x128xf32>
    %7 = tpu.matmul %5, %6, %cst_6 {dimension_numbers = #tpu.dot_dimension_numbers<[1], [0], [0], [1], [0, 0, 1, 1], [], []>} : vector<128x128xbf16>, vector<128x128xbf16>, vector<128x128xf32> -> vector<128x128xf32>
    %cst_7 = arith.constant 0.000000e+00 : f32
    %8 = vector.broadcast %cst_7 : f32 to vector<128x128xf32>
    %9 = arith.maximumf %7, %8 : vector<128x128xf32>
    %10 = arith.truncf %9 : vector<128x128xf32> to vector<128x128xbf16>
    %c0_8 = arith.constant 0 : index
    %c0_9 = arith.constant 0 : index
    %11 = vector.load %arg4[%c0_8, %c0_9] : memref<128x128xbf16, #tpu.memory_space<vmem>>, vector<128x128xbf16>
    %cst_10 = arith.constant dense<0.000000e+00> : vector<128x128xf32>
    %12 = tpu.matmul %10, %11, %cst_10 {dimension_numbers = #tpu.dot_dimension_numbers<[1], [0], [0], [1], [0, 0, 1, 1], [], []>} : vector<128x128xbf16>, vector<128x128xbf16>, vector<128x128xf32> -> vector<128x128xf32>
    %cst_11 = arith.constant 0.000000e+00 : f32
    %13 = vector.broadcast %cst_11 : f32 to vector<128x128xf32>
    %14 = arith.maximumf %12, %13 : vector<128x128xf32>
    %15 = arith.truncf %14 : vector<128x128xf32> to vector<128x128xbf16>
    %c0_12 = arith.constant 0 : index
    %c0_13 = arith.constant 0 : index
    %16 = vector.load %arg5[%c0_12, %c0_13] : memref<128x6xbf16, #tpu.memory_space<vmem>>, vector<128x6xbf16>
    %cst_14 = arith.constant dense<0.000000e+00> : vector<128x6xf32>
    %17 = tpu.matmul %15, %16, %cst_14 {dimension_numbers = #tpu.dot_dimension_numbers<[1], [0], [0], [1], [0, 0, 1, 1], [], []>} : vector<128x128xbf16>, vector<128x6xbf16>, vector<128x6xf32> -> vector<128x6xf32>
    %c0_15 = arith.constant 0 : index
    %c0_16 = arith.constant 0 : index
    %18 = vector.load %arg6[%c0_15, %c0_16] : memref<128x6xf32, #tpu.memory_space<vmem>>, vector<128x6xf32>
    tpu.vector_store %arg6[%c0_15, %c0_16], %17 {strides = array<i32>} : memref<128x6xf32, #tpu.memory_space<vmem>>, vector<128x6xf32>,
    return
  }
  func.func @transform_0(%arg0: i32) -> (i32, i32) {
    %c0_i32 = arith.constant 0 : i32
    %c0_i32_0 = arith.constant 0 : i32
    return %arg0, %c0_i32 : i32, i32
  }
  func.func @transform_1(%arg0: i32) -> (i32, i32) {
    %c0_i32 = arith.constant 0 : i32
    %c0_i32_0 = arith.constant 0 : i32
    %c0_i32_1 = arith.constant 0 : i32
    return %c0_i32, %c0_i32_0 : i32, i32
  }
  func.func @transform_2(%arg0: i32) -> (i32, i32) {
    %c0_i32 = arith.constant 0 : i32
    %c0_i32_0 = arith.constant 0 : i32
    %c0_i32_1 = arith.constant 0 : i32
    return %c0_i32, %c0_i32_0 : i32, i32
  }
  func.func @transform_3(%arg0: i32) -> (i32, i32) {
    %c0_i32 = arith.constant 0 : i32
    %c0_i32_0 = arith.constant 0 : i32
    %c0_i32_1 = arith.constant 0 : i32
    return %c0_i32, %c0_i32_0 : i32, i32
  }
  func.func @transform_4(%arg0: i32) -> (i32, i32) {
    %c0_i32 = arith.constant 0 : i32
    %c0_i32_0 = arith.constant 0 : i32
    %c0_i32_1 = arith.constant 0 : i32
    return %c0_i32, %c0_i32_0 : i32, i32
  }
  func.func @transform_5(%arg0: i32) -> (i32, i32) {
    %c0_i32 = arith.constant 0 : i32
    %c0_i32_0 = arith.constant 0 : i32
    return %arg0, %c0_i32 : i32, i32
  }
}

</mosaic_0001>

<llo_original>
// kernel: tpu_custom_call.1
$region0: #{tpu_custom_call.1}
  #allocation0 [shape = 'u32[]', space=smem, size = 0x4, offset = 0x4, fixed_abs, tag = 'smem constant byte address 0x4 - core index']
  #allocation1 [shape = 'u32[72,128]{1,0:T(1,128)}', space=vmem, size = 0x9000, scoped, tag = 'internal scratch']
  %s0 = inlined_call_operand.vmem [shape: bf16[128,32], index: 0, kind: input, shape index: {}]
  %s1 = inlined_call_operand.vmem [shape: bf16[32,128], index: 1, kind: input, shape index: {}]
  %s2 = inlined_call_operand.vmem [shape: bf16[128,128], index: 2, kind: input, shape index: {}]
  %s3 = inlined_call_operand.vmem [shape: bf16[128,128], index: 3, kind: input, shape index: {}]
  %s4 = inlined_call_operand.vmem [shape: bf16[128,6], index: 4, kind: input, shape index: {}]
  %s5 = inlined_call_operand.vmem [shape: f32[128,6], index: 5, kind: output, shape index: {}]
  %s6 = sld [smem:[#allocation0]]
  $region30: #{tpu_custom_call.1} parent=0
    _
  %s8 = ssub.s32 1, %s6
  %s9 = scalar_select 0, %s8, %s6
  // Predicated region
  $region2: #{tpu_custom_call.1} parent=0 // pred_check
    _
  $region3: #{tpu_custom_call.1} parent=0 // pred_check_branch
    %11 = sbr.rel (0) target = $region5
  $region4: #{tpu_custom_call.1} parent=0 // pred_region
    _
  $region5: #{tpu_custom_call.1} parent=0 // pred_fallthru
    _
  // Predicated region
  $region6: #{tpu_custom_call.1} parent=0 // pred_check
    _
  $region7: #{tpu_custom_call.1} parent=0 // pred_check_branch
    %13 = sbr.rel (0) target = $region9
  $region8: #{tpu_custom_call.1} parent=0 // pred_region
    _
  $region9: #{tpu_custom_call.1} parent=0 // pred_fallthru
    _
  // Predicated region
  $region10: #{tpu_custom_call.1} parent=0 // pred_check
    _
  $region11: #{tpu_custom_call.1} parent=0 // pred_check_branch
    %15 = sbr.rel (0) target = $region13
  $region12: #{tpu_custom_call.1} parent=0 // pred_region
    _
  $region13: #{tpu_custom_call.1} parent=0 // pred_fallthru
    _
  // Predicated region
  $region14: #{tpu_custom_call.1} parent=0 // pred_check
    _
  $region15: #{tpu_custom_call.1} parent=0 // pred_check_branch
    %17 = sbr.rel (0) target = $region17
  $region16: #{tpu_custom_call.1} parent=0 // pred_region
    _
  $region17: #{tpu_custom_call.1} parent=0 // pred_fallthru
    _
  // Predicated region
  $region18: #{tpu_custom_call.1} parent=0 // pred_check
    _
  $region19: #{tpu_custom_call.1} parent=0 // pred_check_branch
    %19 = sbr.rel (0) target = $region21
  $region20: #{tpu_custom_call.1} parent=0 // pred_region
    _
  $region21: #{tpu_custom_call.1} parent=0 // pred_fallthru
    _
  %v21 = vld [vmem:[%s0] sm:$0xf]
  %v22 = vld [vmem:[%s0 + $0x4] sm:$0xf]
  %v23 = vld [vmem:[%s0 + $0x8] sm:$0xf]
  %v24 = vld [vmem:[%s0 + $0xc] sm:$0xf]
  %v25 = vld [vmem:[%s0 + $0x10] sm:$0xf]
  %v26 = vld [vmem:[%s0 + $0x14] sm:$0xf]
  %v27 = vld [vmem:[%s0 + $0x18] sm:$0xf]
  %v28 = vld [vmem:[%s0 + $0x1c] sm:$0xf]
  %v29 = vld [vmem:[%s0 + $0x20] sm:$0xf]
  %v30 = vld [vmem:[%s0 + $0x24] sm:$0xf]
  %v31 = vld [vmem:[%s0 + $0x28] sm:$0xf]
  %v32 = vld [vmem:[%s0 + $0x2c] sm:$0xf]
  %v33 = vld [vmem:[%s0 + $0x30] sm:$0xf]
  %v34 = vld [vmem:[%s0 + $0x34] sm:$0xf]
  %v35 = vld [vmem:[%s0 + $0x38] sm:$0xf]
  %v36 = vld [vmem:[%s0 + $0x3c] sm:$0xf]
  %v37 = vld [vmem:[%s1] sm:$0xf]
  %v38 = vld [vmem:[%s1 + $0x4] sm:$0xf]
  %v39 = vld [vmem:[%s1 + $0x8] sm:$0xf]
  %v40 = vld [vmem:[%s1 + $0xc] sm:$0xf]
  %v57 = vunpack.c.l.b16 %v21
  %v58 = vunpack.c.l.b16 %v22
  %v59 = vunpack.c.l.b16 %v23
  %v60 = vunpack.c.l.b16 %v24
  %v61 = vunpack.c.l.b16 %v25
  %v62 = vunpack.c.l.b16 %v26
  %v63 = vunpack.c.l.b16 %v27
  %v64 = vunpack.c.l.b16 %v28
  %v65 = vunpack.c.l.b16 %v29
  %v66 = vunpack.c.l.b16 %v30
  %v67 = vunpack.c.l.b16 %v31
  %v68 = vunpack.c.l.b16 %v32
  %v69 = vunpack.c.l.b16 %v33
  %v70 = vunpack.c.l.b16 %v34
  %v71 = vunpack.c.l.b16 %v35
  %v72 = vunpack.c.l.b16 %v36
  %v73 = vpack.c.b16 %v58, %v57
  %v74 = vpack.c.b16 %v60, %v59
  %v75 = vpack.c.b16 %v62, %v61
  %v76 = vpack.c.b16 %v64, %v63
  %v77 = vpack.c.b16 %v66, %v65
  %v78 = vpack.c.b16 %v68, %v67
  %v79 = vpack.c.b16 %v70, %v69
  %v80 = vpack.c.b16 %v72, %v71
  %v85 = vunpack.c.l.b16 %v37
  %v86 = vunpack.c.l.b16 %v38
  %v87 = vunpack.c.l.b16 %v39
  %v88 = vunpack.c.l.b16 %v40
  %v89 = vpack.c.b16 %v86, %v85
  %v90 = vpack.c.b16 %v88, %v87
  %vm93 = vcmask 261120
  %v95 = vsel %vm93, %v73, 0
  %v98 = vsel %vm93, %v74, 0
  %v101 = vsel %vm93, %v75, 0
  %v104 = vsel %vm93, %v76, 0
  %v107 = vsel %vm93, %v77, 0
  %v110 = vsel %vm93, %v78, 0
  %v113 = vsel %vm93, %v79, 0
  %v116 = vsel %vm93, %v80, 0
  %118 = vmatpush.bf16.msra.mxu0 0
  %119 = vmatpush.bf16.msra.mxu0 0
  %120 = vmatpush.bf16.msra.mxu0 0
  %121 = vmatpush.bf16.msra.mxu0 0
  %122 = vmatpush.bf16.msra.mxu0 0
  %123 = vmatpush.bf16.msra.mxu0 0
  %124 = vmatpush.bf16.msra.mxu0 %v90
  %125 = vmatpush.bf16.msra.mxu0 %v89
  %126 = vmatmul.bf16.gmra.mxu0 %v95
  %v127 = vpop.f32.mrf.mxu0
  %v128 = vadd.f32 0.0, %v127
  %v129 = vpop.f32.mrf.mxu0
  %v130 = vadd.f32 0.0, %v129
  %131 = vmatmul.bf16.gmra.mxu0 %v98
  %v132 = vpop.f32.mrf.mxu0
  %v133 = vadd.f32 0.0, %v132
  %v134 = vpop.f32.mrf.mxu0
  %v135 = vadd.f32 0.0, %v134
  %136 = vmatmul.bf16.gmra.mxu0 %v101
  %v137 = vpop.f32.mrf.mxu0
  %v138 = vadd.f32 0.0, %v137
  %v139 = vpop.f32.mrf.mxu0
  %v140 = vadd.f32 0.0, %v139
  %141 = vmatmul.bf16.gmra.mxu0 %v104
  %v142 = vpop.f32.mrf.mxu0
  %v143 = vadd.f32 0.0, %v142
  %v144 = vpop.f32.mrf.mxu0
  %v145 = vadd.f32 0.0, %v144
  %146 = vmatmul.bf16.gmra.mxu0 %v107
  %v147 = vpop.f32.mrf.mxu0
  %v148 = vadd.f32 0.0, %v147
  %v149 = vpop.f32.mrf.mxu0
  %v150 = vadd.f32 0.0, %v149
  %151 = vmatmul.bf16.gmra.mxu0 %v110
  %v152 = vpop.f32.mrf.mxu0
  %v153 = vadd.f32 0.0, %v152
  %v154 = vpop.f32.mrf.mxu0
  %v155 = vadd.f32 0.0, %v154
  %156 = vmatmul.bf16.gmra.mxu0 %v113
  %v157 = vpop.f32.mrf.mxu0
  %v158 = vadd.f32 0.0, %v157
  %v159 = vpop.f32.mrf.mxu0
  %v160 = vadd.f32 0.0, %v159
  %161 = vmatmul.bf16.gmra.mxu0 %v116
  %v162 = vpop.f32.mrf.mxu0
  %v163 = vadd.f32 0.0, %v162
  %v164 = vpop.f32.mrf.mxu0
  %v165 = vadd.f32 0.0, %v164
  %166 = vdwg.mxu0
  %v167 = vmax.f32 %v128, 0.0
  %v168 = vmax.f32 %v130, 0.0
  %v169 = vmax.f32 %v133, 0.0
  %v170 = vmax.f32 %v135, 0.0
  %v171 = vmax.f32 %v138, 0.0
  %v172 = vmax.f32 %v140, 0.0
  %v173 = vmax.f32 %v143, 0.0
  %v174 = vmax.f32 %v145, 0.0
  %v175 = vmax.f32 %v148, 0.0
  %v176 = vmax.f32 %v150, 0.0
  %v177 = vmax.f32 %v153, 0.0
  %v178 = vmax.f32 %v155, 0.0
  %v179 = vmax.f32 %v158, 0.0
  %v180 = vmax.f32 %v160, 0.0
  %v181 = vmax.f32 %v163, 0.0
  %v182 = vmax.f32 %v165, 0.0
  %v183 = vpack.c.bf16 %v168, %v167
  %v184 = vpack.c.bf16 %v170, %v169
  %v185 = vpack.c.bf16 %v172, %v171
  %v186 = vpack.c.bf16 %v174, %v173
  %v187 = vpack.c.bf16 %v176, %v175
  %v188 = vpack.c.bf16 %v178, %v177
  %v189 = vpack.c.bf16 %v180, %v179
  %v190 = vpack.c.bf16 %v182, %v181
  %v191 = vld [vmem:[%s2] sm:$0xf]
  %v192 = vld [vmem:[%s2 + $0x4] sm:$0xf]
  %v193 = vld [vmem:[%s2 + $0x8] sm:$0xf]
  %v194 = vld [vmem:[%s2 + $0xc] sm:$0xf]
  %v195 = vld [vmem:[%s2 + $0x10] sm:$0xf]
  %v196 = vld [vmem:[%s2 + $0x14] sm:$0xf]
  %v197 = vld [vmem:[%s2 + $0x18] sm:$0xf]
  %v198 = vld [vmem:[%s2 + $0x1c] sm:$0xf]
  %v199 = vld [vmem:[%s2 + $0x20] sm:$0xf]
  %v200 = vld [vmem:[%s2 + $0x24] sm:$0xf]
  %v201 = vld [vmem:[%s2 + $0x28] sm:$0xf]
  %v202 = vld [vmem:[%s2 + $0x2c] sm:$0xf]
  %v203 = vld [vmem:[%s2 + $0x30] sm:$0xf]
  %v204 = vld [vmem:[%s2 + $0x34] sm:$0xf]
  %v205 = vld [vmem:[%s2 + $0x38] sm:$0xf]
  %v206 = vld [vmem:[%s2 + $0x3c] sm:$0xf]
  %v223 = vunpack.c.l.b16 %v191
  %v224 = vunpack.c.l.b16 %v192
  %v225 = vunpack.c.l.b16 %v193
  %v226 = vunpack.c.l.b16 %v194
  %v227 = vunpack.c.l.b16 %v195
  %v228 = vunpack.c.l.b16 %v196
  %v229 = vunpack.c.l.b16 %v197
  %v230 = vunpack.c.l.b16 %v198
  %v231 = vunpack.c.l.b16 %v199
  %v232 = vunpack.c.l.b16 %v200
  %v233 = vunpack.c.l.b16 %v201
  %v234 = vunpack.c.l.b16 %v202
  %v235 = vunpack.c.l.b16 %v203
  %v236 = vunpack.c.l.b16 %v204
  %v237 = vunpack.c.l.b16 %v205
  %v238 = vunpack.c.l.b16 %v206
  %v239 = vpack.c.b16 %v224, %v223
  %v240 = vpack.c.b16 %v226, %v225
  %v241 = vpack.c.b16 %v228, %v227
  %v242 = vpack.c.b16 %v230, %v229
  %v243 = vpack.c.b16 %v232, %v231
  %v244 = vpack.c.b16 %v234, %v233
  %v245 = vpack.c.b16 %v236, %v235
  %v246 = vpack.c.b16 %v238, %v237
  %255 = vmatpush.bf16.msra.mxu0 %v246
  %256 = vmatpush.bf16.msra.mxu0 %v245
  %257 = vmatpush.bf16.msra.mxu0 %v244
  %258 = vmatpush.bf16.msra.mxu0 %v243
  %259 = vmatpush.bf16.msra.mxu0 %v242
  %260 = vmatpush.bf16.msra.mxu0 %v241
  %261 = vmatpush.bf16.msra.mxu0 %v240
  %262 = vmatpush.bf16.msra.mxu0 %v239
  %263 = vmatmul.bf16.gmra.mxu0 %v183
  %v264 = vpop.f32.mrf.mxu0
  %v265 = vadd.f32 0.0, %v264
  %v266 = vpop.f32.mrf.mxu0
  %v267 = vadd.f32 0.0, %v266
  %268 = vmatmul.bf16.gmra.mxu0 %v184
  %v269 = vpop.f32.mrf.mxu0
  %v270 = vadd.f32 0.0, %v269
  %v271 = vpop.f32.mrf.mxu0
  %v272 = vadd.f32 0.0, %v271
  %273 = vmatmul.bf16.gmra.mxu0 %v185
  %v274 = vpop.f32.mrf.mxu0
  %v275 = vadd.f32 0.0, %v274
  %v276 = vpop.f32.mrf.mxu0
  %v277 = vadd.f32 0.0, %v276
  %278 = vmatmul.bf16.gmra.mxu0 %v186
  %v279 = vpop.f32.mrf.mxu0
  %v280 = vadd.f32 0.0, %v279
  %v281 = vpop.f32.mrf.mxu0
  %v282 = vadd.f32 0.0, %v281
  %283 = vmatmul.bf16.gmra.mxu0 %v187
  %v284 = vpop.f32.mrf.mxu0
  %v285 = vadd.f32 0.0, %v284
  %v286 = vpop.f32.mrf.mxu0
  %v287 = vadd.f32 0.0, %v286
  %288 = vmatmul.bf16.gmra.mxu0 %v188
  %v289 = vpop.f32.mrf.mxu0
  %v290 = vadd.f32 0.0, %v289
  %v291 = vpop.f32.mrf.mxu0
  %v292 = vadd.f32 0.0, %v291
  %293 = vmatmul.bf16.gmra.mxu0 %v189
  %v294 = vpop.f32.mrf.mxu0
  %v295 = vadd.f32 0.0, %v294
  %v296 = vpop.f32.mrf.mxu0
  %v297 = vadd.f32 0.0, %v296
  %298 = vmatmul.bf16.gmra.mxu0 %v190
  %v299 = vpop.f32.mrf.mxu0
  %v300 = vadd.f32 0.0, %v299
  %v301 = vpop.f32.mrf.mxu0
  %v302 = vadd.f32 0.0, %v301
  %303 = vdwg.mxu0
  %v304 = vmax.f32 %v265, 0.0
  %v305 = vmax.f32 %v267, 0.0
  %v306 = vmax.f32 %v270, 0.0
  %v307 = vmax.f32 %v272, 0.0
  %v308 = vmax.f32 %v275, 0.0
  %v309 = vmax.f32 %v277, 0.0
  %v310 = vmax.f32 %v280, 0.0
  %v311 = vmax.f32 %v282, 0.0
  %v312 = vmax.f32 %v285, 0.0
  %v313 = vmax.f32 %v287, 0.0
  %v314 = vmax.f32 %v290, 0.0
  %v315 = vmax.f32 %v292, 0.0
  %v316 = vmax.f32 %v295, 0.0
  %v317 = vmax.f32 %v297, 0.0
  %v318 = vmax.f32 %v300, 0.0
  %v319 = vmax.f32 %v302, 0.0
  %v320 = vpack.c.bf16 %v305, %v304
  %v321 = vpack.c.bf16 %v307, %v306
  %v322 = vpack.c.bf16 %v309, %v308
  %v323 = vpack.c.bf16 %v311, %v310
  %v324 = vpack.c.bf16 %v313, %v312
  %v325 = vpack.c.bf16 %v315, %v314
  %v326 = vpack.c.bf16 %v317, %v316
  %v327 = vpack.c.bf16 %v319, %v318
  %v328 = vld [vmem:[%s3] sm:$0xf]
  %v329 = vld [vmem:[%s3 + $0x4] sm:$0xf]
  %v330 = vld [vmem:[%s3 + $0x8] sm:$0xf]
  %v331 = vld [vmem:[%s3 + $0xc] sm:$0xf]
  %v332 = vld [vmem:[%s3 + $0x10] sm:$0xf]
  %v333 = vld [vmem:[%s3 + $0x14] sm:$0xf]
  %v334 = vld [vmem:[%s3 + $0x18] sm:$0xf]
  %v335 = vld [vmem:[%s3 + $0x1c] sm:$0xf]
  %v336 = vld [vmem:[%s3 + $0x20] sm:$0xf]
  %v337 = vld [vmem:[%s3 + $0x24] sm:$0xf]
  %v338 = vld [vmem:[%s3 + $0x28] sm:$0xf]
  %v339 = vld [vmem:[%s3 + $0x2c] sm:$0xf]
  %v340 = vld [vmem:[%s3 + $0x30] sm:$0xf]
  %v341 = vld [vmem:[%s3 + $0x34] sm:$0xf]
  %v342 = vld [vmem:[%s3 + $0x38] sm:$0xf]
  %v343 = vld [vmem:[%s3 + $0x3c] sm:$0xf]
  %v360 = vunpack.c.l.b16 %v328
  %v361 = vunpack.c.l.b16 %v329
  %v362 = vunpack.c.l.b16 %v330
  %v363 = vunpack.c.l.b16 %v331
  %v364 = vunpack.c.l.b16 %v332
  %v365 = vunpack.c.l.b16 %v333
  %v366 = vunpack.c.l.b16 %v334
  %v367 = vunpack.c.l.b16 %v335
  %v368 = vunpack.c.l.b16 %v336
  %v369 = vunpack.c.l.b16 %v337
  %v370 = vunpack.c.l.b16 %v338
  %v371 = vunpack.c.l.b16 %v339
  %v372 = vunpack.c.l.b16 %v340
  %v373 = vunpack.c.l.b16 %v341
  %v374 = vunpack.c.l.b16 %v342
  %v375 = vunpack.c.l.b16 %v343
  %v376 = vpack.c.b16 %v361, %v360
  %v377 = vpack.c.b16 %v363, %v362
  %v378 = vpack.c.b16 %v365, %v364
  %v379 = vpack.c.b16 %v367, %v366
  %v380 = vpack.c.b16 %v369, %v368
  %v381 = vpack.c.b16 %v371, %v370
  %v382 = vpack.c.b16 %v373, %v372
  %v383 = vpack.c.b16 %v375, %v374
  %392 = vmatpush.bf16.msra.mxu0 %v383
  %393 = vmatpush.bf16.msra.mxu0 %v382
  %394 = vmatpush.bf16.msra.mxu0 %v381
  %395 = vmatpush.bf16.msra.mxu0 %v380
  %396 = vmatpush.bf16.msra.mxu0 %v379
  %397 = vmatpush.bf16.msra.mxu0 %v378
  %398 = vmatpush.bf16.msra.mxu0 %v377
  %399 = vmatpush.bf16.msra.mxu0 %v376
  %400 = vmatmul.bf16.gmra.mxu0 %v320
  %v401 = vpop.f32.mrf.mxu0
  %v402 = vadd.f32 0.0, %v401
  %v403 = vpop.f32.mrf.mxu0
  %v404 = vadd.f32 0.0, %v403
  %405 = vmatmul.bf16.gmra.mxu0 %v321
  %v406 = vpop.f32.mrf.mxu0
  %v407 = vadd.f32 0.0, %v406
  %v408 = vpop.f32.mrf.mxu0
  %v409 = vadd.f32 0.0, %v408
  %410 = vmatmul.bf16.gmra.mxu0 %v322
  %v411 = vpop.f32.mrf.mxu0
  %v412 = vadd.f32 0.0, %v411
  %v413 = vpop.f32.mrf.mxu0
  %v414 = vadd.f32 0.0, %v413
  %415 = vmatmul.bf16.gmra.mxu0 %v323
  %v416 = vpop.f32.mrf.mxu0
  %v417 = vadd.f32 0.0, %v416
  %v418 = vpop.f32.mrf.mxu0
  %v419 = vadd.f32 0.0, %v418
  %420 = vmatmul.bf16.gmra.mxu0 %v324
  %v421 = vpop.f32.mrf.mxu0
  %v422 = vadd.f32 0.0, %v421
  %v423 = vpop.f32.mrf.mxu0
  %v424 = vadd.f32 0.0, %v423
  %425 = vmatmul.bf16.gmra.mxu0 %v325
  %v426 = vpop.f32.mrf.mxu0
  %v427 = vadd.f32 0.0, %v426
  %v428 = vpop.f32.mrf.mxu0
  %v429 = vadd.f32 0.0, %v428
  %430 = vmatmul.bf16.gmra.mxu0 %v326
  %v431 = vpop.f32.mrf.mxu0
  %v432 = vadd.f32 0.0, %v431
  %v433 = vpop.f32.mrf.mxu0
  %v434 = vadd.f32 0.0, %v433
  %435 = vmatmul.bf16.gmra.mxu0 %v327
  %v436 = vpop.f32.mrf.mxu0
  %v437 = vadd.f32 0.0, %v436
  %v438 = vpop.f32.mrf.mxu0
  %v439 = vadd.f32 0.0, %v438
  %440 = vdwg.mxu0
  %v441 = vmax.f32 %v402, 0.0
  %v442 = vmax.f32 %v404, 0.0
  %v443 = vmax.f32 %v407, 0.0
  %v444 = vmax.f32 %v409, 0.0
  %v445 = vmax.f32 %v412, 0.0
  %v446 = vmax.f32 %v414, 0.0
  %v447 = vmax.f32 %v417, 0.0
  %v448 = vmax.f32 %v419, 0.0
  %v449 = vmax.f32 %v422, 0.0
  %v450 = vmax.f32 %v424, 0.0
  %v451 = vmax.f32 %v427, 0.0
  %v452 = vmax.f32 %v429, 0.0
  %v453 = vmax.f32 %v432, 0.0
  %v454 = vmax.f32 %v434, 0.0
  %v455 = vmax.f32 %v437, 0.0
  %v456 = vmax.f32 %v439, 0.0
  %v457 = vpack.c.bf16 %v442, %v441
  %v458 = vpack.c.bf16 %v444, %v443
  %v459 = vpack.c.bf16 %v446, %v445
  %v460 = vpack.c.bf16 %v448, %v447
  %v461 = vpack.c.bf16 %v450, %v449
  %v462 = vpack.c.bf16 %v452, %v451
  %v463 = vpack.c.bf16 %v454, %v453
  %v464 = vpack.c.bf16 %v456, %v455
  %v465 = vld [vmem:[%s4] sm:$0xf]
  %v466 = vld [vmem:[%s4 + $0x4] sm:$0xf]
  %v467 = vld [vmem:[%s4 + $0x8] sm:$0xf]
  %v468 = vld [vmem:[%s4 + $0xc] sm:$0xf]
  %v469 = vld [vmem:[%s4 + $0x10] sm:$0xf]
  %v470 = vld [vmem:[%s4 + $0x14] sm:$0xf]
  %v471 = vld [vmem:[%s4 + $0x18] sm:$0xf]
  %v472 = vld [vmem:[%s4 + $0x1c] sm:$0xf]
  %v473 = vld [vmem:[%s4 + $0x20] sm:$0xf]
  %v474 = vld [vmem:[%s4 + $0x24] sm:$0xf]
  %v475 = vld [vmem:[%s4 + $0x28] sm:$0xf]
  %v476 = vld [vmem:[%s4 + $0x2c] sm:$0xf]
  %v477 = vld [vmem:[%s4 + $0x30] sm:$0xf]
  %v478 = vld [vmem:[%s4 + $0x34] sm:$0xf]
  %v479 = vld [vmem:[%s4 + $0x38] sm:$0xf]
  %v480 = vld [vmem:[%s4 + $0x3c] sm:$0xf]
  %v497 = vunpack.c.l.b16 %v465
  %v498 = vunpack.c.l.b16 %v466
  %v499 = vunpack.c.l.b16 %v467
  %v500 = vunpack.c.l.b16 %v468
  %v501 = vunpack.c.l.b16 %v469
  %v502 = vunpack.c.l.b16 %v470
  %v503 = vunpack.c.l.b16 %v471
  %v504 = vunpack.c.l.b16 %v472
  %v505 = vunpack.c.l.b16 %v473
  %v506 = vunpack.c.l.b16 %v474
  %v507 = vunpack.c.l.b16 %v475
  %v508 = vunpack.c.l.b16 %v476
  %v509 = vunpack.c.l.b16 %v477
  %v510 = vunpack.c.l.b16 %v478
  %v511 = vunpack.c.l.b16 %v479
  %v512 = vunpack.c.l.b16 %v480
  %v513 = vpack.c.b16 %v498, %v497
  %v514 = vpack.c.b16 %v500, %v499
  %v515 = vpack.c.b16 %v502, %v501
  %v516 = vpack.c.b16 %v504, %v503
  %v517 = vpack.c.b16 %v506, %v505
  %v518 = vpack.c.b16 %v508, %v507
  %v519 = vpack.c.b16 %v510, %v509
  %v520 = vpack.c.b16 %v512, %v511
  %529 = vmatpush.bf16.msra.mxu0 %v520
  %530 = vmatpush.bf16.msra.mxu0 %v519
  %531 = vmatpush.bf16.msra.mxu0 %v518
  %532 = vmatpush.bf16.msra.mxu0 %v517
  %533 = vmatpush.bf16.msra.mxu0 %v516
  %534 = vmatpush.bf16.msra.mxu0 %v515
  %535 = vmatpush.bf16.msra.mxu0 %v514
  %536 = vmatpush.bf16.msra.mxu0 %v513
  %537 = vmatmul.bf16.gmra.mxu0 %v457
  %v538 = vpop.f32.mrf.mxu0
  %v539 = vadd.f32 0.0, %v538
  %v540 = vpop.f32.mrf.mxu0
  %v541 = vadd.f32 0.0, %v540
  %542 = vmatmul.bf16.gmra.mxu0 %v458
  %v543 = vpop.f32.mrf.mxu0
  %v544 = vadd.f32 0.0, %v543
  %v545 = vpop.f32.mrf.mxu0
  %v546 = vadd.f32 0.0, %v545
  %547 = vmatmul.bf16.gmra.mxu0 %v459
  %v548 = vpop.f32.mrf.mxu0
  %v549 = vadd.f32 0.0, %v548
  %v550 = vpop.f32.mrf.mxu0
  %v551 = vadd.f32 0.0, %v550
  %552 = vmatmul.bf16.gmra.mxu0 %v460
  %v553 = vpop.f32.mrf.mxu0
  %v554 = vadd.f32 0.0, %v553
  %v555 = vpop.f32.mrf.mxu0
  %v556 = vadd.f32 0.0, %v555
  %557 = vmatmul.bf16.gmra.mxu0 %v461
  %v558 = vpop.f32.mrf.mxu0
  %v559 = vadd.f32 0.0, %v558
  %v560 = vpop.f32.mrf.mxu0
  %v561 = vadd.f32 0.0, %v560
  %562 = vmatmul.bf16.gmra.mxu0 %v462
  %v563 = vpop.f32.mrf.mxu0
  %v564 = vadd.f32 0.0, %v563
  %v565 = vpop.f32.mrf.mxu0
  %v566 = vadd.f32 0.0, %v565
  %567 = vmatmul.bf16.gmra.mxu0 %v463
  %v568 = vpop.f32.mrf.mxu0
  %v569 = vadd.f32 0.0, %v568
  %v570 = vpop.f32.mrf.mxu0
  %v571 = vadd.f32 0.0, %v570
  %572 = vmatmul.bf16.gmra.mxu0 %v464
  %v573 = vpop.f32.mrf.mxu0
  %v574 = vadd.f32 0.0, %v573
  %v575 = vpop.f32.mrf.mxu0
  %v576 = vadd.f32 0.0, %v575
  %577 = vdwg.mxu0
  %vm578 = vcmask 48128
  %579 = vst.msk [vmem:[%s5] sm:$0xff] %vm578, %v539
  %580 = vst.msk [vmem:[%s5 + $0x8] sm:$0xff] %vm578, %v541
  %581 = vst.msk [vmem:[%s5 + $0x10] sm:$0xff] %vm578, %v544
  %582 = vst.msk [vmem:[%s5 + $0x18] sm:$0xff] %vm578, %v546
  %583 = vst.msk [vmem:[%s5 + $0x20] sm:$0xff] %vm578, %v549
  %584 = vst.msk [vmem:[%s5 + $0x28] sm:$0xff] %vm578, %v551
  %585 = vst.msk [vmem:[%s5 + $0x30] sm:$0xff] %vm578, %v554
  %586 = vst.msk [vmem:[%s5 + $0x38] sm:$0xff] %vm578, %v556
  %587 = vst.msk [vmem:[%s5 + $0x40] sm:$0xff] %vm578, %v559
  %588 = vst.msk [vmem:[%s5 + $0x48] sm:$0xff] %vm578, %v561
  %589 = vst.msk [vmem:[%s5 + $0x50] sm:$0xff] %vm578, %v564
  %590 = vst.msk [vmem:[%s5 + $0x58] sm:$0xff] %vm578, %v566
  %591 = vst.msk [vmem:[%s5 + $0x60] sm:$0xff] %vm578, %v569
  %592 = vst.msk [vmem:[%s5 + $0x68] sm:$0xff] %vm578, %v571
  %593 = vst.msk [vmem:[%s5 + $0x70] sm:$0xff] %vm578, %v574
  %594 = vst.msk [vmem:[%s5 + $0x78] sm:$0xff] %vm578, %v576
  // Predicated region
  $region22: #{tpu_custom_call.1} parent=0 // pred_check
    _
  $region23: #{tpu_custom_call.1} parent=0 // pred_check_branch
    %596 = sbr.rel (0) target = $region25
  $region24: #{tpu_custom_call.1} parent=0 // pred_region
    _
  $region25: #{tpu_custom_call.1} parent=0 // pred_fallthru
    _
  // Predicated region
  $region26: #{tpu_custom_call.1} parent=0 // pred_check
    _
  $region27: #{tpu_custom_call.1} parent=0 // pred_check_branch
    %598 = sbr.rel (0) target = $region29
  $region28: #{tpu_custom_call.1} parent=0 // pred_region
    _
  $region29: #{tpu_custom_call.1} parent=0 // pred_fallthru
    _

// kernel: tpu_custom_call.1
$region0: #{tpu_custom_call.1}
  #allocation0 [shape = 'u32[]', space=smem, size = 0x4, offset = 0x4, fixed_abs, tag = 'smem constant byte address 0x4 - core index']
  #allocation1 [shape = 'u32[72,128]{1,0:T(1,128)}', space=vmem, size = 0x9000, scoped, tag = 'internal scratch']
  %s0 = inlined_call_operand.vmem [shape: bf16[128,32], index: 0, kind: input, shape index: {}]
  %s1 = inlined_call_operand.vmem [shape: bf16[32,128], index: 1, kind: input, shape index: {}]
  %s2 = inlined_call_operand.vmem [shape: bf16[128,128], index: 2, kind: input, shape index: {}]
  %s3 = inlined_call_operand.vmem [shape: bf16[128,128], index: 3, kind: input, shape index: {}]
  %s4 = inlined_call_operand.vmem [shape: bf16[128,6], index: 4, kind: input, shape index: {}]
  %s5 = inlined_call_operand.vmem [shape: f32[128,6], index: 5, kind: output, shape index: {}]
  %s6 = sld [smem:[#allocation0]]
  $region30: #{tpu_custom_call.1} parent=0
    _
  %s8 = ssub.s32 1, %s6
  %s9 = scalar_select 0, %s8, %s6
  // Predicated region
  $region2: #{tpu_custom_call.1} parent=0 // pred_check
    _
  $region3: #{tpu_custom_call.1} parent=0 // pred_check_branch
    %11 = sbr.rel (0) target = $region5
  $region4: #{tpu_custom_call.1} parent=0 // pred_region
    _
  $region5: #{tpu_custom_call.1} parent=0 // pred_fallthru
    _
  // Predicated region
  $region6: #{tpu_custom_call.1} parent=0 // pred_check
    _
  $region7: #{tpu_custom_call.1} parent=0 // pred_check_branch
    %13 = sbr.rel (0) target = $region9
  $region8: #{tpu_custom_call.1} parent=0 // pred_region
    _
  $region9: #{tpu_custom_call.1} parent=0 // pred_fallthru
    _
  // Predicated region
  $region10: #{tpu_custom_call.1} parent=0 // pred_check
    _
  $region11: #{tpu_custom_call.1} parent=0 // pred_check_branch
    %15 = sbr.rel (0) target = $region13
  $region12: #{tpu_custom_call.1} parent=0 // pred_region
    _
  $region13: #{tpu_custom_call.1} parent=0 // pred_fallthru
    _
  // Predicated region
  $region14: #{tpu_custom_call.1} parent=0 // pred_check
    _
  $region15: #{tpu_custom_call.1} parent=0 // pred_check_branch
    %17 = sbr.rel (0) target = $region17
  $region16: #{tpu_custom_call.1} parent=0 // pred_region
    _
  $region17: #{tpu_custom_call.1} parent=0 // pred_fallthru
    _
  // Predicated region
  $region18: #{tpu_custom_call.1} parent=0 // pred_check
    _
  $region19: #{tpu_custom_call.1} parent=0 // pred_check_branch
    %19 = sbr.rel (0) target = $region21
  $region20: #{tpu_custom_call.1} parent=0 // pred_region
    _
  $region21: #{tpu_custom_call.1} parent=0 // pred_fallthru
    _
  %v21 = vld [vmem:[%s0] sm:$0xf]
  %v22 = vld [vmem:[%s0 + $0x4] sm:$0xf]
  %v23 = vld [vmem:[%s0 + $0x8] sm:$0xf]
  %v24 = vld [vmem:[%s0 + $0xc] sm:$0xf]
  %v25 = vld [vmem:[%s0 + $0x10] sm:$0xf]
  %v26 = vld [vmem:[%s0 + $0x14] sm:$0xf]
  %v27 = vld [vmem:[%s0 + $0x18] sm:$0xf]
  %v28 = vld [vmem:[%s0 + $0x1c] sm:$0xf]
  %v29 = vld [vmem:[%s0 + $0x20] sm:$0xf]
  %v30 = vld [vmem:[%s0 + $0x24] sm:$0xf]
  %v31 = vld [vmem:[%s0 + $0x28] sm:$0xf]
  %v32 = vld [vmem:[%s0 + $0x2c] sm:$0xf]
  %v33 = vld [vmem:[%s0 + $0x30] sm:$0xf]
  %v34 = vld [vmem:[%s0 + $0x34] sm:$0xf]
  %v35 = vld [vmem:[%s0 + $0x38] sm:$0xf]
  %v36 = vld [vmem:[%s0 + $0x3c] sm:$0xf]
  %v37 = vld [vmem:[%s1] sm:$0xf]
  %v38 = vld [vmem:[%s1 + $0x4] sm:$0xf]
  %v39 = vld [vmem:[%s1 + $0x8] sm:$0xf]
  %v40 = vld [vmem:[%s1 + $0xc] sm:$0xf]
  %v57 = vunpack.c.l.b16 %v21
  %v58 = vunpack.c.l.b16 %v22
  %v59 = vunpack.c.l.b16 %v23
  %v60 = vunpack.c.l.b16 %v24
  %v61 = vunpack.c.l.b16 %v25
  %v62 = vunpack.c.l.b16 %v26
  %v63 = vunpack.c.l.b16 %v27
  %v64 = vunpack.c.l.b16 %v28
  %v65 = vunpack.c.l.b16 %v29
  %v66 = vunpack.c.l.b16 %v30
  %v67 = vunpack.c.l.b16 %v31
  %v68 = vunpack.c.l.b16 %v32
  %v69 = vunpack.c.l.b16 %v33
  %v70 = vunpack.c.l.b16 %v34
  %v71 = vunpack.c.l.b16 %v35
  %v72 = vunpack.c.l.b16 %v36
  %v73 = vpack.c.b16 %v58, %v57
  %v74 = vpack.c.b16 %v60, %v59
  %v75 = vpack.c.b16 %v62, %v61
  %v76 = vpack.c.b16 %v64, %v63
  %v77 = vpack.c.b16 %v66, %v65
  %v78 = vpack.c.b16 %v68, %v67
  %v79 = vpack.c.b16 %v70, %v69
  %v80 = vpack.c.b16 %v72, %v71
  %v85 = vunpack.c.l.b16 %v37
  %v86 = vunpack.c.l.b16 %v38
  %v87 = vunpack.c.l.b16 %v39
  %v88 = vunpack.c.l.b16 %v40
  %v89 = vpack.c.b16 %v86, %v85
  %v90 = vpack.c.b16 %v88, %v87
  %vm93 = vcmask 261120
  %v95 = vsel %vm93, %v73, 0
  %v98 = vsel %vm93, %v74, 0
  %v101 = vsel %vm93, %v75, 0
  %v104 = vsel %vm93, %v76, 0
  %v107 = vsel %vm93, %v77, 0
  %v110 = vsel %vm93, %v78, 0
  %v113 = vsel %vm93, %v79, 0
  %v116 = vsel %vm93, %v80, 0
  %118 = vmatpush.bf16.msra.mxu0 0
  %119 = vmatpush.bf16.msra.mxu0 0
  %120 = vmatpush.bf16.msra.mxu0 0
  %121 = vmatpush.bf16.msra.mxu0 0
  %122 = vmatpush.bf16.msra.mxu0 0
  %123 = vmatpush.bf16.msra.mxu0 0
  %124 = vmatpush.bf16.msra.mxu0 %v90
  %125 = vmatpush.bf16.msra.mxu0 %v89
  %126 = vmatmul.bf16.gmra.mxu0 %v95
  %v127 = vpop.f32.mrf.mxu0
  %v128 = vadd.f32 0.0, %v127
  %v129 = vpop.f32.mrf.mxu0
  %v130 = vadd.f32 0.0, %v129
  %131 = vmatmul.bf16.gmra.mxu0 %v98
  %v132 = vpop.f32.mrf.mxu0
  %v133 = vadd.f32 0.0, %v132
  %v134 = vpop.f32.mrf.mxu0
  %v135 = vadd.f32 0.0, %v134
  %136 = vmatmul.bf16.gmra.mxu0 %v101
  %v137 = vpop.f32.mrf.mxu0
  %v138 = vadd.f32 0.0, %v137
  %v139 = vpop.f32.mrf.mxu0
  %v140 = vadd.f32 0.0, %v139
  %141 = vmatmul.bf16.gmra.mxu0 %v104
  %v142 = vpop.f32.mrf.mxu0
  %v143 = vadd.f32 0.0, %v142
  %v144 = vpop.f32.mrf.mxu0
  %v145 = vadd.f32 0.0, %v144
  %146 = vmatmul.bf16.gmra.mxu0 %v107
  %v147 = vpop.f32.mrf.mxu0
  %v148 = vadd.f32 0.0, %v147
  %v149 = vpop.f32.mrf.mxu0
  %v150 = vadd.f32 0.0, %v149
  %151 = vmatmul.bf16.gmra.mxu0 %v110
  %v152 = vpop.f32.mrf.mxu0
  %v153 = vadd.f32 0.0, %v152
  %v154 = vpop.f32.mrf.mxu0
  %v155 = vadd.f32 0.0, %v154
  %156 = vmatmul.bf16.gmra.mxu0 %v113
  %v157 = vpop.f32.mrf.mxu0
  %v158 = vadd.f32 0.0, %v157
  %v159 = vpop.f32.mrf.mxu0
  %v160 = vadd.f32 0.0, %v159
  %161 = vmatmul.bf16.gmra.mxu0 %v116
  %v162 = vpop.f32.mrf.mxu0
  %v163 = vadd.f32 0.0, %v162
  %v164 = vpop.f32.mrf.mxu0
  %v165 = vadd.f32 0.0, %v164
  %166 = vdwg.mxu0
  %v167 = vmax.f32 %v128, 0.0
  %v168 = vmax.f32 %v130, 0.0
  %v169 = vmax.f32 %v133, 0.0
  %v170 = vmax.f32 %v135, 0.0
  %v171 = vmax.f32 %v138, 0.0
  %v172 = vmax.f32 %v140, 0.0
  %v173 = vmax.f32 %v143, 0.0
  %v174 = vmax.f32 %v145, 0.0
  %v175 = vmax.f32 %v148, 0.0
  %v176 = vmax.f32 %v150, 0.0
  %v177 = vmax.f32 %v153, 0.0
  %v178 = vmax.f32 %v155, 0.0
  %v179 = vmax.f32 %v158, 0.0
  %v180 = vmax.f32 %v160, 0.0
  %v181 = vmax.f32 %v163, 0.0
  %v182 = vmax.f32 %v165, 0.0
  %v183 = vpack.c.bf16 %v168, %v167
  %v184 = vpack.c.bf16 %v170, %v169
  %v185 = vpack.c.bf16 %v172, %v171
  %v186 = vpack.c.bf16 %v174, %v173
  %v187 = vpack.c.bf16 %v176, %v175
  %v188 = vpack.c.bf16 %v178, %v177
  %v189 = vpack.c.bf16 %v180, %v179
  %v190 = vpack.c.bf16 %v182, %v181
  %v191 = vld [vmem:[%s2] sm:$0xf]
  %v192 = vld [vmem:[%s2 + $0x4] sm:$0xf]
  %v193 = vld [vmem:[%s2 + $0x8] sm:$0xf]
  %v194 = vld [vmem:[%s2 + $0xc] sm:$0xf]
  %v195 = vld [vmem:[%s2 + $0x10] sm:$0xf]
  %v196 = vld [vmem:[%s2 + $0x14] sm:$0xf]
  %v197 = vld [vmem:[%s2 + $0x18] sm:$0xf]
  %v198 = vld [vmem:[%s2 + $0x1c] sm:$0xf]
  %v199 = vld [vmem:[%s2 + $0x20] sm:$0xf]
  %v200 = vld [vmem:[%s2 + $0x24] sm:$0xf]
  %v201 = vld [vmem:[%s2 + $0x28] sm:$0xf]
  %v202 = vld [vmem:[%s2 + $0x2c] sm:$0xf]
  %v203 = vld [vmem:[%s2 + $0x30] sm:$0xf]
  %v204 = vld [vmem:[%s2 + $0x34] sm:$0xf]
  %v205 = vld [vmem:[%s2 + $0x38] sm:$0xf]
  %v206 = vld [vmem:[%s2 + $0x3c] sm:$0xf]
  %v223 = vunpack.c.l.b16 %v191
  %v224 = vunpack.c.l.b16 %v192
  %v225 = vunpack.c.l.b16 %v193
  %v226 = vunpack.c.l.b16 %v194
  %v227 = vunpack.c.l.b16 %v195
  %v228 = vunpack.c.l.b16 %v196
  %v229 = vunpack.c.l.b16 %v197
  %v230 = vunpack.c.l.b16 %v198
  %v231 = vunpack.c.l.b16 %v199
  %v232 = vunpack.c.l.b16 %v200
  %v233 = vunpack.c.l.b16 %v201
  %v234 = vunpack.c.l.b16 %v202
  %v235 = vunpack.c.l.b16 %v203
  %v236 = vunpack.c.l.b16 %v204
  %v237 = vunpack.c.l.b16 %v205
  %v238 = vunpack.c.l.b16 %v206
  %v239 = vpack.c.b16 %v224, %v223
  %v240 = vpack.c.b16 %v226, %v225
  %v241 = vpack.c.b16 %v228, %v227
  %v242 = vpack.c.b16 %v230, %v229
  %v243 = vpack.c.b16 %v232, %v231
  %v244 = vpack.c.b16 %v234, %v233
  %v245 = vpack.c.b16 %v236, %v235
  %v246 = vpack.c.b16 %v238, %v237
  %255 = vmatpush.bf16.msra.mxu0 %v246
  %256 = vmatpush.bf16.msra.mxu0 %v245
  %257 = vmatpush.bf16.msra.mxu0 %v244
  %258 = vmatpush.bf16.msra.mxu0 %v243
  %259 = vmatpush.bf16.msra.mxu0 %v242
  %260 = vmatpush.bf16.msra.mxu0 %v241
  %261 = vmatpush.bf16.msra.mxu0 %v240
  %262 = vmatpush.bf16.msra.mxu0 %v239
  %263 = vmatmul.bf16.gmra.mxu0 %v183
  %v264 = vpop.f32.mrf.mxu0
  %v265 = vadd.f32 0.0, %v264
  %v266 = vpop.f32.mrf.mxu0
  %v267 = vadd.f32 0.0, %v266
  %268 = vmatmul.bf16.gmra.mxu0 %v184
  %v269 = vpop.f32.mrf.mxu0
  %v270 = vadd.f32 0.0, %v269
  %v271 = vpop.f32.mrf.mxu0
  %v272 = vadd.f32 0.0, %v271
  %273 = vmatmul.bf16.gmra.mxu0 %v185
  %v274 = vpop.f32.mrf.mxu0
  %v275 = vadd.f32 0.0, %v274
  %v276 = vpop.f32.mrf.mxu0
  %v277 = vadd.f32 0.0, %v276
  %278 = vmatmul.bf16.gmra.mxu0 %v186
  %v279 = vpop.f32.mrf.mxu0
  %v280 = vadd.f32 0.0, %v279
  %v281 = vpop.f32.mrf.mxu0
  %v282 = vadd.f32 0.0, %v281
  %283 = vmatmul.bf16.gmra.mxu0 %v187
  %v284 = vpop.f32.mrf.mxu0
  %v285 = vadd.f32 0.0, %v284
  %v286 = vpop.f32.mrf.mxu0
  %v287 = vadd.f32 0.0, %v286
  %288 = vmatmul.bf16.gmra.mxu0 %v188
  %v289 = vpop.f32.mrf.mxu0
  %v290 = vadd.f32 0.0, %v289
  %v291 = vpop.f32.mrf.mxu0
  %v292 = vadd.f32 0.0, %v291
  %293 = vmatmul.bf16.gmra.mxu0 %v189
  %v294 = vpop.f32.mrf.mxu0
  %v295 = vadd.f32 0.0, %v294
  %v296 = vpop.f32.mrf.mxu0
  %v297 = vadd.f32 0.0, %v296
  %298 = vmatmul.bf16.gmra.mxu0 %v190
  %v299 = vpop.f32.mrf.mxu0
  %v300 = vadd.f32 0.0, %v299
  %v301 = vpop.f32.mrf.mxu0
  %v302 = vadd.f32 0.0, %v301
  %303 = vdwg.mxu0
  %v304 = vmax.f32 %v265, 0.0
  %v305 = vmax.f32 %v267, 0.0
  %v306 = vmax.f32 %v270, 0.0
  %v307 = vmax.f32 %v272, 0.0
  %v308 = vmax.f32 %v275, 0.0
  %v309 = vmax.f32 %v277, 0.0
  %v310 = vmax.f32 %v280, 0.0
  %v311 = vmax.f32 %v282, 0.0
  %v312 = vmax.f32 %v285, 0.0
  %v313 = vmax.f32 %v287, 0.0
  %v314 = vmax.f32 %v290, 0.0
  %v315 = vmax.f32 %v292, 0.0
  %v316 = vmax.f32 %v295, 0.0
  %v317 = vmax.f32 %v297, 0.0
  %v318 = vmax.f32 %v300, 0.0
  %v319 = vmax.f32 %v302, 0.0
  %v320 = vpack.c.bf16 %v305, %v304
  %v321 = vpack.c.bf16 %v307, %v306
  %v322 = vpack.c.bf16 %v309, %v308
  %v323 = vpack.c.bf16 %v311, %v310
  %v324 = vpack.c.bf16 %v313, %v312
  %v325 = vpack.c.bf16 %v315, %v314
  %v326 = vpack.c.bf16 %v317, %v316
  %v327 = vpack.c.bf16 %v319, %v318
  %v328 = vld [vmem:[%s3] sm:$0xf]
  %v329 = vld [vmem:[%s3 + $0x4] sm:$0xf]
  %v330 = vld [vmem:[%s3 + $0x8] sm:$0xf]
  %v331 = vld [vmem:[%s3 + $0xc] sm:$0xf]
  %v332 = vld [vmem:[%s3 + $0x10] sm:$0xf]
  %v333 = vld [vmem:[%s3 + $0x14] sm:$0xf]
  %v334 = vld [vmem:[%s3 + $0x18] sm:$0xf]
  %v335 = vld [vmem:[%s3 + $0x1c] sm:$0xf]
  %v336 = vld [vmem:[%s3 + $0x20] sm:$0xf]
  %v337 = vld [vmem:[%s3 + $0x24] sm:$0xf]
  %v338 = vld [vmem:[%s3 + $0x28] sm:$0xf]
  %v339 = vld [vmem:[%s3 + $0x2c] sm:$0xf]
  %v340 = vld [vmem:[%s3 + $0x30] sm:$0xf]
  %v341 = vld [vmem:[%s3 + $0x34] sm:$0xf]
  %v342 = vld [vmem:[%s3 + $0x38] sm:$0xf]
  %v343 = vld [vmem:[%s3 + $0x3c] sm:$0xf]
  %v360 = vunpack.c.l.b16 %v328
  %v361 = vunpack.c.l.b16 %v329
  %v362 = vunpack.c.l.b16 %v330
  %v363 = vunpack.c.l.b16 %v331
  %v364 = vunpack.c.l.b16 %v332
  %v365 = vunpack.c.l.b16 %v333
  %v366 = vunpack.c.l.b16 %v334
  %v367 = vunpack.c.l.b16 %v335
  %v368 = vunpack.c.l.b16 %v336
  %v369 = vunpack.c.l.b16 %v337
  %v370 = vunpack.c.l.b16 %v338
  %v371 = vunpack.c.l.b16 %v339
  %v372 = vunpack.c.l.b16 %v340
  %v373 = vunpack.c.l.b16 %v341
  %v374 = vunpack.c.l.b16 %v342
  %v375 = vunpack.c.l.b16 %v343
  %v376 = vpack.c.b16 %v361, %v360
  %v377 = vpack.c.b16 %v363, %v362
  %v378 = vpack.c.b16 %v365, %v364
  %v379 = vpack.c.b16 %v367, %v366
  %v380 = vpack.c.b16 %v369, %v368
  %v381 = vpack.c.b16 %v371, %v370
  %v382 = vpack.c.b16 %v373, %v372
  %v383 = vpack.c.b16 %v375, %v374
  %392 = vmatpush.bf16.msra.mxu0 %v383
  %393 = vmatpush.bf16.msra.mxu0 %v382
  %394 = vmatpush.bf16.msra.mxu0 %v381
  %395 = vmatpush.bf16.msra.mxu0 %v380
  %396 = vmatpush.bf16.msra.mxu0 %v379
  %397 = vmatpush.bf16.msra.mxu0 %v378
  %398 = vmatpush.bf16.msra.mxu0 %v377
  %399 = vmatpush.bf16.msra.mxu0 %v376
  %400 = vmatmul.bf16.gmra.mxu0 %v320
  %v401 = vpop.f32.mrf.mxu0
  %v402 = vadd.f32 0.0, %v401
  %v403 = vpop.f32.mrf.mxu0
  %v404 = vadd.f32 0.0, %v403
  %405 = vmatmul.bf16.gmra.mxu0 %v321
  %v406 = vpop.f32.mrf.mxu0
  %v407 = vadd.f32 0.0, %v406
  %v408 = vpop.f32.mrf.mxu0
  %v409 = vadd.f32 0.0, %v408
  %410 = vmatmul.bf16.gmra.mxu0 %v322
  %v411 = vpop.f32.mrf.mxu0
  %v412 = vadd.f32 0.0, %v411
  %v413 = vpop.f32.mrf.mxu0
  %v414 = vadd.f32 0.0, %v413
  %415 = vmatmul.bf16.gmra.mxu0 %v323
  %v416 = vpop.f32.mrf.mxu0
  %v417 = vadd.f32 0.0, %v416
  %v418 = vpop.f32.mrf.mxu0
  %v419 = vadd.f32 0.0, %v418
  %420 = vmatmul.bf16.gmra.mxu0 %v324
  %v421 = vpop.f32.mrf.mxu0
  %v422 = vadd.f32 0.0, %v421
  %v423 = vpop.f32.mrf.mxu0
  %v424 = vadd.f32 0.0, %v423
  %425 = vmatmul.bf16.gmra.mxu0 %v325
  %v426 = vpop.f32.mrf.mxu0
  %v427 = vadd.f32 0.0, %v426
  %v428 = vpop.f32.mrf.mxu0
  %v429 = vadd.f32 0.0, %v428
  %430 = vmatmul.bf16.gmra.mxu0 %v326
  %v431 = vpop.f32.mrf.mxu0
  %v432 = vadd.f32 0.0, %v431
  %v433 = vpop.f32.mrf.mxu0
  %v434 = vadd.f32 0.0, %v433
  %435 = vmatmul.bf16.gmra.mxu0 %v327
  %v436 = vpop.f32.mrf.mxu0
  %v437 = vadd.f32 0.0, %v436
  %v438 = vpop.f32.mrf.mxu0
  %v439 = vadd.f32 0.0, %v438
  %440 = vdwg.mxu0
  %v441 = vmax.f32 %v402, 0.0
  %v442 = vmax.f32 %v404, 0.0
  %v443 = vmax.f32 %v407, 0.0
  %v444 = vmax.f32 %v409, 0.0
  %v445 = vmax.f32 %v412, 0.0
  %v446 = vmax.f32 %v414, 0.0
  %v447 = vmax.f32 %v417, 0.0
  %v448 = vmax.f32 %v419, 0.0
  %v449 = vmax.f32 %v422, 0.0
  %v450 = vmax.f32 %v424, 0.0
  %v451 = vmax.f32 %v427, 0.0
  %v452 = vmax.f32 %v429, 0.0
  %v453 = vmax.f32 %v432, 0.0
  %v454 = vmax.f32 %v434, 0.0
  %v455 = vmax.f32 %v437, 0.0
  %v456 = vmax.f32 %v439, 0.0
  %v457 = vpack.c.bf16 %v442, %v441
  %v458 = vpack.c.bf16 %v444, %v443
  %v459 = vpack.c.bf16 %v446, %v445
  %v460 = vpack.c.bf16 %v448, %v447
  %v461 = vpack.c.bf16 %v450, %v449
  %v462 = vpack.c.bf16 %v452, %v451
  %v463 = vpack.c.bf16 %v454, %v453
  %v464 = vpack.c.bf16 %v456, %v455
  %v465 = vld [vmem:[%s4] sm:$0xf]
  %v466 = vld [vmem:[%s4 + $0x4] sm:$0xf]
  %v467 = vld [vmem:[%s4 + $0x8] sm:$0xf]
  %v468 = vld [vmem:[%s4 + $0xc] sm:$0xf]
  %v469 = vld [vmem:[%s4 + $0x10] sm:$0xf]
  %v470 = vld [vmem:[%s4 + $0x14] sm:$0xf]
  %v471 = vld [vmem:[%s4 + $0x18] sm:$0xf]
  %v472 = vld [vmem:[%s4 + $0x1c] sm:$0xf]
  %v473 = vld [vmem:[%s4 + $0x20] sm:$0xf]
  %v474 = vld [vmem:[%s4 + $0x24] sm:$0xf]
  %v475 = vld [vmem:[%s4 + $0x28] sm:$0xf]
  %v476 = vld [vmem:[%s4 + $0x2c] sm:$0xf]
  %v477 = vld [vmem:[%s4 + $0x30] sm:$0xf]
  %v478 = vld [vmem:[%s4 + $0x34] sm:$0xf]
  %v479 = vld [vmem:[%s4 + $0x38] sm:$0xf]
  %v480 = vld [vmem:[%s4 + $0x3c] sm:$0xf]
  %v497 = vunpack.c.l.b16 %v465
  %v498 = vunpack.c.l.b16 %v466
  %v499 = vunpack.c.l.b16 %v467
  %v500 = vunpack.c.l.b16 %v468
  %v501 = vunpack.c.l.b16 %v469
  %v502 = vunpack.c.l.b16 %v470
  %v503 = vunpack.c.l.b16 %v471
  %v504 = vunpack.c.l.b16 %v472
  %v505 = vunpack.c.l.b16 %v473
  %v506 = vunpack.c.l.b16 %v474
  %v507 = vunpack.c.l.b16 %v475
  %v508 = vunpack.c.l.b16 %v476
  %v509 = vunpack.c.l.b16 %v477
  %v510 = vunpack.c.l.b16 %v478
  %v511 = vunpack.c.l.b16 %v479
  %v512 = vunpack.c.l.b16 %v480
  %v513 = vpack.c.b16 %v498, %v497
  %v514 = vpack.c.b16 %v500, %v499
  %v515 = vpack.c.b16 %v502, %v501
  %v516 = vpack.c.b16 %v504, %v503
  %v517 = vpack.c.b16 %v506, %v505
  %v518 = vpack.c.b16 %v508, %v507
  %v519 = vpack.c.b16 %v510, %v509
  %v520 = vpack.c.b16 %v512, %v511
  %529 = vmatpush.bf16.msra.mxu0 %v520
  %530 = vmatpush.bf16.msra.mxu0 %v519
  %531 = vmatpush.bf16.msra.mxu0 %v518
  %532 = vmatpush.bf16.msra.mxu0 %v517
  %533 = vmatpush.bf16.msra.mxu0 %v516
  %534 = vmatpush.bf16.msra.mxu0 %v515
  %535 = vmatpush.bf16.msra.mxu0 %v514
  %536 = vmatpush.bf16.msra.mxu0 %v513
  %537 = vmatmul.bf16.gmra.mxu0 %v457
  %v538 = vpop.f32.mrf.mxu0
  %v539 = vadd.f32 0.0, %v538
  %v540 = vpop.f32.mrf.mxu0
  %v541 = vadd.f32 0.0, %v540
  %542 = vmatmul.bf16.gmra.mxu0 %v458
  %v543 = vpop.f32.mrf.mxu0
  %v544 = vadd.f32 0.0, %v543
  %v545 = vpop.f32.mrf.mxu0
  %v546 = vadd.f32 0.0, %v545
  %547 = vmatmul.bf16.gmra.mxu0 %v459
  %v548 = vpop.f32.mrf.mxu0
  %v549 = vadd.f32 0.0, %v548
  %v550 = vpop.f32.mrf.mxu0
  %v551 = vadd.f32 0.0, %v550
  %552 = vmatmul.bf16.gmra.mxu0 %v460
  %v553 = vpop.f32.mrf.mxu0
  %v554 = vadd.f32 0.0, %v553
  %v555 = vpop.f32.mrf.mxu0
  %v556 = vadd.f32 0.0, %v555
  %557 = vmatmul.bf16.gmra.mxu0 %v461
  %v558 = vpop.f32.mrf.mxu0
  %v559 = vadd.f32 0.0, %v558
  %v560 = vpop.f32.mrf.mxu0
  %v561 = vadd.f32 0.0, %v560
  %562 = vmatmul.bf16.gmra.mxu0 %v462
  %v563 = vpop.f32.mrf.mxu0
  %v564 = vadd.f32 0.0, %v563
  %v565 = vpop.f32.mrf.mxu0
  %v566 = vadd.f32 0.0, %v565
  %567 = vmatmul.bf16.gmra.mxu0 %v463
  %v568 = vpop.f32.mrf.mxu0
  %v569 = vadd.f32 0.0, %v568
  %v570 = vpop.f32.mrf.mxu0
  %v571 = vadd.f32 0.0, %v570
  %572 = vmatmul.bf16.gmra.mxu0 %v464
  %v573 = vpop.f32.mrf.mxu0
  %v574 = vadd.f32 0.0, %v573
  %v575 = vpop.f32.mrf.mxu0
  %v576 = vadd.f32 0.0, %v575
  %577 = vdwg.mxu0
  %vm578 = vcmask 48128
  %579 = vst.msk [vmem:[%s5] sm:$0xff] %vm578, %v539
  %580 = vst.msk [vmem:[%s5 + $0x8] sm:$0xff] %vm578, %v541
  %581 = vst.msk [vmem:[%s5 + $0x10] sm:$0xff] %vm578, %v544
  %582 = vst.msk [vmem:[%s5 + $0x18] sm:$0xff] %vm578, %v546
  %583 = vst.msk [vmem:[%s5 + $0x20] sm:$0xff] %vm578, %v549
  %584 = vst.msk [vmem:[%s5 + $0x28] sm:$0xff] %vm578, %v551
  %585 = vst.msk [vmem:[%s5 + $0x30] sm:$0xff] %vm578, %v554
  %586 = vst.msk [vmem:[%s5 + $0x38] sm:$0xff] %vm578, %v556
  %587 = vst.msk [vmem:[%s5 + $0x40] sm:$0xff] %vm578, %v559
  %588 = vst.msk [vmem:[%s5 + $0x48] sm:$0xff] %vm578, %v561
  %589 = vst.msk [vmem:[%s5 + $0x50] sm:$0xff] %vm578, %v564
  %590 = vst.msk [vmem:[%s5 + $0x58] sm:$0xff] %vm578, %v566
  %591 = vst.msk [vmem:[%s5 + $0x60] sm:$0xff] %vm578, %v569
  %592 = vst.msk [vmem:[%s5 + $0x68] sm:$0xff] %vm578, %v571
  %593 = vst.msk [vmem:[%s5 + $0x70] sm:$0xff] %vm578, %v574
  %594 = vst.msk [vmem:[%s5 + $0x78] sm:$0xff] %vm578, %v576
  // Predicated region
  $region22: #{tpu_custom_call.1} parent=0 // pred_check
    _
  $region23: #{tpu_custom_call.1} parent=0 // pred_check_branch
    %596 = sbr.rel (0) target = $region25
  $region24: #{tpu_custom_call.1} parent=0 // pred_region
    _
  $region25: #{tpu_custom_call.1} parent=0 // pred_fallthru
    _
  // Predicated region
  $region26: #{tpu_custom_call.1} parent=0 // pred_check
    _
  $region27: #{tpu_custom_call.1} parent=0 // pred_check_branch
    %598 = sbr.rel (0) target = $region29
  $region28: #{tpu_custom_call.1} parent=0 // pred_region
    _
  $region29: #{tpu_custom_call.1} parent=0 // pred_fallthru
    _

</llo_original>
